<compile_context>
chip_gen: v5e
topology: v5e:2x2
jax: 0.10.0
libtpu: 0.0.40
codegen_flags: <defaults>
</compile_context>

<pallas_src>
import functools

import jax
import jax.numpy as jnp
from jax.experimental import pallas as pl
from jax.experimental.pallas import tpu as pltpu

_LANE = 128
_VMEM_LIMIT = 48 * 1024 * 1024


# ----------------------------------------------------------------------------
# Fused single-pass kernel (whole (C, T) slab of one batch element resident).
# ----------------------------------------------------------------------------
def _fused_gln_kernel(x_ref, gamma_ref, beta_ref, o_ref, *, eps):
    x = x_ref[...].astype(jnp.float32)                        # (C, T)
    cnt = jnp.float32(x.shape[0] * x.shape[1])
    mean = jnp.sum(x, keepdims=True) / cnt                    # (1, 1)
    var = jnp.sum(x * x, keepdims=True) / cnt - mean * mean   # E[x^2] - mean^2
    var = jnp.maximum(var, 0.0)                               # cancellation guard
    inv = jax.lax.rsqrt(var + eps)                            # (1, 1)
    scale = gamma_ref[...].astype(jnp.float32) * inv          # (C, 1)
    shift = beta_ref[...].astype(jnp.float32) - mean * scale  # (C, 1)
    o_ref[...] = (x * scale + shift).astype(o_ref.dtype)


# ----------------------------------------------------------------------------
# Two-pass path: pass 1 (global statistics -> fused affine params).
# ----------------------------------------------------------------------------
def _gln_stats_kernel(x_ref, gamma_ref, beta_ref, scale_ref, shift_ref,
                      sum_acc, sq_acc, *, n_feat, t_true, t_tile, eps):
    # x_ref:    (C, tT) tile of one batch element (batch dim squeezed)
    # gamma/beta: (C, 1) resident
    # scale_ref/shift_ref: (C, 1) per-batch outputs (resident across t)
    # sum_acc/sq_acc: (1, tT) f32 vector accumulators (persist across steps)
    t = pl.program_id(1)
    last = pl.num_programs(1) - 1

    @pl.when(t == 0)
    def _():
        sum_acc[...] = jnp.zeros_like(sum_acc)
        sq_acc[...] = jnp.zeros_like(sq_acc)

    def accumulate(xv):
        # Sublane-direction partial reduce only (cross-vreg VPU adds); the
        # 128-lane tree reduce is deferred to the once-per-batch epilogue.
        sum_acc[...] += jnp.sum(xv, axis=0, keepdims=True)
        sq_acc[...] += jnp.sum(xv * xv, axis=0, keepdims=True)

    if t_true % t_tile != 0:
        # A ragged last tile exists: only that tile pays for the mask.
        @pl.when(t != last)
        def _():
            accumulate(x_ref[...].astype(jnp.float32))

        @pl.when(t == last)
        def _():
            xv = x_ref[...].astype(jnp.float32)
            col = jax.lax.broadcasted_iota(jnp.int32, xv.shape, 1) + t * t_tile
            accumulate(jnp.where(col < t_true, xv, 0.0))
    else:
        accumulate(x_ref[...].astype(jnp.float32))

    @pl.when(t == last)
    def _():
        cnt = jnp.float32(n_feat * t_true)
        total = jnp.sum(sum_acc[...], keepdims=True)           # (1, 1)
        total_sq = jnp.sum(sq_acc[...], keepdims=True)         # (1, 1)
        mean = total / cnt
        var = jnp.maximum(total_sq / cnt - mean * mean, 0.0)
        inv = jax.lax.rsqrt(var + eps)
        scale = gamma_ref[...].astype(jnp.float32) * inv        # (C, 1)
        scale_ref[...] = scale
        shift_ref[...] = beta_ref[...].astype(jnp.float32) - mean * scale


# ----------------------------------------------------------------------------
# Two-pass path: pass 2 (apply fused affine).
# ----------------------------------------------------------------------------
def _gln_apply_kernel(x_ref, scale_ref, shift_ref, o_ref):
    # x_ref: (C, tT)   scale_ref/shift_ref: (C, 1)
    x = x_ref[...].astype(jnp.float32)
    o_ref[...] = (x * scale_ref[...] + shift_ref[...]).astype(o_ref.dtype)


# ----------------------------------------------------------------------------
# Wrapper.
# ----------------------------------------------------------------------------
def global_layer_norm(x, gamma=None, beta=None, *, eps=1e-5,
                      tile_bytes=2 * 1024 * 1024,
                      fused_slab_bytes=4 * 1024 * 1024):
    """GlobalLayerNorm forward. x: (B, C, T); gamma/beta: (C, 1) or (C,)."""
    B, C, T = x.shape
    if gamma is None:
        gamma = jnp.ones((C, 1), jnp.float32)
    if beta is None:
        beta = jnp.zeros((C, 1), jnp.float32)
    gamma2 = jnp.asarray(gamma, jnp.float32).reshape(C, 1)
    beta2 = jnp.asarray(beta, jnp.float32).reshape(C, 1)
    eps = float(eps)

    itemsize = x.dtype.itemsize
    slab_f32_bytes = C * T * 4

    # ---- Fast path: single fused pass (2 HBM sweeps instead of 3). ----------
    if slab_f32_bytes <= fused_slab_bytes:
        kern = functools.partial(_fused_gln_kernel, eps=eps)
        return pl.pallas_call(
            kern,
            out_shape=jax.ShapeDtypeStruct((B, C, T), x.dtype),
            grid_spec=pltpu.PrefetchScalarGridSpec(
                num_scalar_prefetch=0,
                grid=(B,),
                in_specs=[
                    pl.BlockSpec((None, C, T), lambda b: (b, 0, 0)),   # x
                    pl.BlockSpec((C, 1), lambda b: (0, 0)),            # gamma
                    pl.BlockSpec((C, 1), lambda b: (0, 0)),            # beta
                ],
                out_specs=pl.BlockSpec((None, C, T), lambda b: (b, 0, 0)),
            ),
            compiler_params=pltpu.CompilerParams(
                dimension_semantics=("parallel",),
                vmem_limit_bytes=_VMEM_LIMIT),
        )(x, gamma2, beta2)

    # ---- Two-pass path. ------------------------------------------------------
    # Byte-budgeted, lane-dense T tiling: ~tile_bytes of x per block.
    tT = tile_bytes // (C * itemsize)
    tT = max(_LANE, (tT // _LANE) * _LANE)
    if tT >= T:
        tT = T
    nT = pl.cdiv(T, tT)

    stats_kernel = functools.partial(
        _gln_stats_kernel, n_feat=C, t_true=T, t_tile=tT, eps=eps)

    # Pass 1: per-batch global statistics -> fused affine params (scale, shift).
    scale, shift = pl.pallas_call(
        stats_kernel,
        out_shape=(jax.ShapeDtypeStruct((B, C, 1), jnp.float32),
                   jax.ShapeDtypeStruct((B, C, 1), jnp.float32)),
        grid_spec=pltpu.PrefetchScalarGridSpec(
            num_scalar_prefetch=0,
            grid=(B, nT),
            in_specs=[
                pl.BlockSpec((None, C, tT), lambda b, t: (b, 0, t)),   # x
                pl.BlockSpec((C, 1), lambda b, t: (0, 0)),             # gamma
                pl.BlockSpec((C, 1), lambda b, t: (0, 0)),             # beta
            ],
            out_specs=(
                pl.BlockSpec((None, C, 1), lambda b, t: (b, 0, 0)),    # scale
                pl.BlockSpec((None, C, 1), lambda b, t: (b, 0, 0)),    # shift
            ),
            scratch_shapes=[pltpu.VMEM((1, tT), jnp.float32),
                            pltpu.VMEM((1, tT), jnp.float32)]),
        compiler_params=pltpu.CompilerParams(
            dimension_semantics=("parallel", "arbitrary"),
            vmem_limit_bytes=_VMEM_LIMIT),
    )(x, gamma2, beta2)

    # Pass 2: o = x*scale + shift, fully parallel / pipelined over (B, T-tiles).
    out = pl.pallas_call(
        _gln_apply_kernel,
        out_shape=jax.ShapeDtypeStruct((B, C, T), x.dtype),
        grid_spec=pltpu.PrefetchScalarGridSpec(
            num_scalar_prefetch=0,
            grid=(B, nT),
            in_specs=[
                pl.BlockSpec((None, C, tT), lambda b, t: (b, 0, t)),   # x
                pl.BlockSpec((None, C, 1), lambda b, t: (b, 0, 0)),    # scale
                pl.BlockSpec((None, C, 1), lambda b, t: (b, 0, 0)),    # shift
            ],
            out_specs=pl.BlockSpec((None, C, tT), lambda b, t: (b, 0, t)),
        ),
        compiler_params=pltpu.CompilerParams(
            dimension_semantics=("parallel", "parallel"),
            vmem_limit_bytes=_VMEM_LIMIT),
    )(x, scale, shift)
    return out


def global_layer_norm_reference(x, gamma, beta, eps=1e-5):
    # Pure-JAX mirror of the PyTorch module, for correctness checking.
    xf = x.astype(jnp.float32)
    mean = jnp.mean(xf, axis=(1, 2), keepdims=True)
    var = jnp.mean((xf - mean) ** 2, axis=(1, 2), keepdims=True)
    g = jnp.asarray(gamma, jnp.float32).reshape(1, -1, 1)
    b = jnp.asarray(beta, jnp.float32).reshape(1, -1, 1)
    y = g * (xf - mean) / jnp.sqrt(var + eps) + b
    return y.astype(x.dtype)


if __name__ == "__main__":
    B, C = 2, 16
    key = jax.random.PRNGKey(0)
    kx1, kx2, kg, kb = jax.random.split(key, 4)

    gamma = jnp.ones((C, 1), jnp.float32) + 0.1 * jax.random.normal(kg, (C, 1), jnp.float32)
    beta = 0.1 * jax.random.normal(kb, (C, 1), jnp.float32)

    # 1) Fused single-pass fast path (small slab).
    T1 = 512
    x1 = jax.random.normal(kx1, (B, C, T1), dtype=jnp.float32)
    out1 = jax.block_until_ready(global_layer_norm(x1, gamma, beta, eps=1e-5))
    ref1 = global_layer_norm_reference(x1, gamma, beta, eps=1e-5)
    assert out1.shape == (B, C, T1)
    assert jnp.allclose(out1, ref1, atol=1e-4, rtol=1e-4), "fused path mismatch"

    # 2) Two-pass tiled path, forced with a small tile so multi-tile
    #    accumulation + the ragged last tile (640 % 256 != 0) are exercised.
    T2 = 640
    x2 = jax.random.normal(kx2, (B, C, T2), dtype=jnp.float32)
    out2 = jax.block_until_ready(
        global_layer_norm(x2, gamma, beta, eps=1e-5,
                          tile_bytes=C * 256 * 4, fused_slab_bytes=0))
    ref2 = global_layer_norm_reference(x2, gamma, beta, eps=1e-5)
    assert out2.shape == (B, C, T2)
    assert jnp.allclose(out2, ref2, atol=1e-4, rtol=1e-4), "two-pass mismatch"

    print("KERNEL_OK")
</pallas_src>

<mosaic_0001>
module attributes {stable_mosaic.version = 11 : i64} {
  func.func @_fused_gln_kernel(%arg0: i32, %arg1: memref<1x16x512xf32, #tpu.memory_space<vmem>>, %arg2: memref<16x1xf32, #tpu.memory_space<vmem>>, %arg3: memref<16x1xf32, #tpu.memory_space<vmem>>, %arg4: memref<1x16x512xf32, #tpu.memory_space<vmem>>) attributes {dimension_semantics = [#tpu.dimension_semantics<parallel>], iteration_bounds = array<i64: 2>, scalar_prefetch = 0 : i64, scratch_operands = 0 : i64, tpu.core_type = #tpu.core_type<tc>, window_params = [{transform_indices = @transform_0, window_bounds = array<i64: 1, 16, 512>}, {pipeline_mode = #tpu.pipeline_mode<synchronous>, transform_indices = @transform_1, window_bounds = array<i64: 16, 1>}, {pipeline_mode = #tpu.pipeline_mode<synchronous>, transform_indices = @transform_2, window_bounds = array<i64: 16, 1>}, {transform_indices = @transform_3, window_bounds = array<i64: 1, 16, 512>}]} {
    %c0 = arith.constant 0 : index
    %c0_0 = arith.constant 0 : index
    %c0_1 = arith.constant 0 : index
    %0 = vector.load %arg1[%c0, %c0_0, %c0_1] : memref<1x16x512xf32, #tpu.memory_space<vmem>>, vector<1x16x512xf32>
    %1 = vector.shape_cast %0 : vector<1x16x512xf32> to vector<16x512xf32>
    %2 = vector.shape_cast %1 : vector<16x512xf32> to vector<1x16x512xf32>
    %cst = arith.constant dense<0.000000e+00> : vector<1xf32>
    %3 = vector.multi_reduction <add>, %2, %cst [1, 2] : vector<1x16x512xf32> to vector<1xf32>
    %4 = vector.shape_cast %3 : vector<1xf32> to vector<1x1x1xf32>
    %5 = vector.extract %4[0, 0, 0] : f32 from vector<1x1x1xf32>
    %6 = vector.broadcast %5 : f32 to vector<1x1xf32>
    %cst_2 = arith.constant 8.192000e+03 : f32
    %7 = vector.broadcast %cst_2 : f32 to vector<1x1xf32>
    %8 = arith.divf %6, %7 : vector<1x1xf32>
    %9 = arith.mulf %1, %1 : vector<16x512xf32>
    %10 = vector.shape_cast %9 : vector<16x512xf32> to vector<1x16x512xf32>
    %cst_3 = arith.constant dense<0.000000e+00> : vector<1xf32>
    %11 = vector.multi_reduction <add>, %10, %cst_3 [1, 2] : vector<1x16x512xf32> to vector<1xf32>
    %12 = vector.shape_cast %11 : vector<1xf32> to vector<1x1x1xf32>
    %13 = vector.extract %12[0, 0, 0] : f32 from vector<1x1x1xf32>
    %14 = vector.broadcast %13 : f32 to vector<1x1xf32>
    %cst_4 = arith.constant 8.192000e+03 : f32
    %15 = vector.broadcast %cst_4 : f32 to vector<1x1xf32>
    %16 = arith.divf %14, %15 : vector<1x1xf32>
    %17 = arith.mulf %8, %8 : vector<1x1xf32>
    %18 = arith.subf %16, %17 : vector<1x1xf32>
    %cst_5 = arith.constant 0.000000e+00 : f32
    %19 = vector.broadcast %cst_5 : f32 to vector<1x1xf32>
    %20 = arith.maximumf %18, %19 : vector<1x1xf32>
    %cst_6 = arith.constant 9.99999974E-6 : f32
    %21 = vector.broadcast %cst_6 : f32 to vector<1x1xf32>
    %22 = arith.addf %20, %21 : vector<1x1xf32>
    %23 = math.rsqrt %22 : vector<1x1xf32>
    %c0_7 = arith.constant 0 : index
    %c0_8 = arith.constant 0 : index
    %24 = vector.load %arg2[%c0_7, %c0_8] : memref<16x1xf32, #tpu.memory_space<vmem>>, vector<16x1xf32>
    %25 = vector.broadcast %23 : vector<1x1xf32> to vector<16x1xf32>
    %26 = arith.mulf %24, %25 : vector<16x1xf32>
    %c0_9 = arith.constant 0 : index
    %c0_10 = arith.constant 0 : index
    %27 = vector.load %arg3[%c0_9, %c0_10] : memref<16x1xf32, #tpu.memory_space<vmem>>, vector<16x1xf32>
    %28 = vector.broadcast %8 : vector<1x1xf32> to vector<16x1xf32>
    %29 = arith.mulf %28, %26 : vector<16x1xf32>
    %30 = arith.subf %27, %29 : vector<16x1xf32>
    %31 = vector.broadcast %26 : vector<16x1xf32> to vector<16x512xf32>
    %32 = arith.mulf %1, %31 : vector<16x512xf32>
    %33 = vector.broadcast %30 : vector<16x1xf32> to vector<16x512xf32>
    %34 = arith.addf %32, %33 : vector<16x512xf32>
    %c0_11 = arith.constant 0 : index
    %c0_12 = arith.constant 0 : index
    %c0_13 = arith.constant 0 : index
    %35 = vector.load %arg4[%c0_11, %c0_12, %c0_13] : memref<1x16x512xf32, #tpu.memory_space<vmem>>, vector<1x16x512xf32>
    %36 = vector.shape_cast %35 : vector<1x16x512xf32> to vector<16x512xf32>
    %37 = vector.shape_cast %34 : vector<16x512xf32> to vector<1x16x512xf32>
    tpu.vector_store %arg4[%c0_11, %c0_12, %c0_13], %37 {strides = array<i32>} : memref<1x16x512xf32, #tpu.memory_space<vmem>>, vector<1x16x512xf32>,
    return
  }
  func.func @transform_0(%arg0: i32) -> (i32, i32, i32) {
    %c0_i32 = arith.constant 0 : i32
    %c0_i32_0 = arith.constant 0 : i32
    %c0_i32_1 = arith.constant 0 : i32
    return %arg0, %c0_i32, %c0_i32_0 : i32, i32, i32
  }
  func.func @transform_1(%arg0: i32) -> (i32, i32) {
    %c0_i32 = arith.constant 0 : i32
    %c0_i32_0 = arith.constant 0 : i32
    %c0_i32_1 = arith.constant 0 : i32
    return %c0_i32, %c0_i32_0 : i32, i32
  }
  func.func @transform_2(%arg0: i32) -> (i32, i32) {
    %c0_i32 = arith.constant 0 : i32
    %c0_i32_0 = arith.constant 0 : i32
    %c0_i32_1 = arith.constant 0 : i32
    return %c0_i32, %c0_i32_0 : i32, i32
  }
  func.func @transform_3(%arg0: i32) -> (i32, i32, i32) {
    %c0_i32 = arith.constant 0 : i32
    %c0_i32_0 = arith.constant 0 : i32
    %c0_i32_1 = arith.constant 0 : i32
    return %arg0, %c0_i32, %c0_i32_0 : i32, i32, i32
  }
}

</mosaic_0001>

<llo_original>
// kernel: tpu_custom_call.1
$region0: #{tpu_custom_call.1}
  #allocation0 [shape = 'u32[]', space=smem, size = 0x4, offset = 0x4, fixed_abs, tag = 'smem constant byte address 0x4 - core index']
  #allocation1 [shape = 'u32[72,128]{1,0:T(1,128)}', space=vmem, size = 0x9000, scoped, tag = 'internal scratch']
  %s0 = inlined_call_operand.hbm [shape: f32[2,16,512], index: 0, kind: input, shape index: {}]
  %s1 = inlined_call_operand.vmem [shape: f32[16,1], index: 1, kind: input, shape index: {}]
  %s2 = inlined_call_operand.vmem [shape: f32[16,1], index: 2, kind: input, shape index: {}]
  %s3 = inlined_call_operand.hbm [shape: f32[2,16,512], index: 3, kind: output, shape index: {}]
  %s4 = sld [smem:[#allocation0]]
  $region49: #{tpu_custom_call.1} parent=0
    _
  %s6 = ssub.s32 1, %s4
  %s7 = scalar_select 0, %s6, %s4
  $region1: #{tpu_custom_call.1} parent=0
    #allocation2 [shape = 'u8[65536]{0}', space=vmem, size = 0x10000, scoped, tag = 'input window, operand 0']
    #allocation3 [shape = 's32[2]{0}', space=sflag, size = 0x8, scoped, tag = 'scoped memory for tpu_custom_call.1']
    #allocation4 [shape = 's32[2]{0}', space=sflag, size = 0x8, scoped, tag = 'scoped memory for tpu_custom_call.1']
    #allocation5 [shape = 'u8[65536]{0}', space=vmem, size = 0x10000, scoped, tag = 'output window, operand 0']
    %8 = vsyncpa [#allocation3], 0
    %s9 = scalar_lea.sflag [#allocation3], 1
    %10 = vsyncpa %s9, 0
    %11 = vsyncpa [#allocation4], 0
    %s12 = scalar_lea.sflag [#allocation4], 1
    %13 = vsyncpa %s12, 0
    loop: start=0, step=1, limit=4
    $region2: #{tpu_custom_call.1} parent=1 // loop_pre_header
      _
    $region3: #{tpu_custom_call.1} parent=1 // loop_header
      %s15 = sphi 0, %s19
      %p16 = scmp.ge.s32.totalorder %s15, 4
      %s25 = sphi 0, %s27
      %s28 = sphi 0, %s25
      %s29 = sphi 0, %s28
      %s45 = sphi 0, %s29
      %s49 = sphi 0, %s49
      %s51 = sphi 0, %s49
      %s52 = sphi 0, %s51
      %s66 = sphi 0, %s52
      %s70 = sphi 0, %s70
      %s72 = sphi 0, %s70
      %s73 = sphi 0, %s72
      %s87 = sphi 0, %s73
      %s93 = sphi 0, %s95
      %s96 = sphi 0, %s93
      %s97 = sphi 0, %s96
      %s113 = sphi 0, %s97
    $region4: #{tpu_custom_call.1} parent=1 // loop_header_branch
      %18 = sbr.rel (%p16) target = $region8
    $region5: #{tpu_custom_call.1} parent=1 // loop_body
      %s20 = ssub.s32 %s15, 1
      %s21 = ssub.s32 %s15, 2
      %s22 = sadd.s32 %s15, 1
      %s23 = ssub.s32 %s15, %s22
      %p24 = scmp.eq.s32.totalorder %s23, 0
      %s26 = sadd.s32 %s25, 1
      %s27 = scalar_select %p24, %s25, %s26
      %p30 = pneg %p24
      %p31 = scmp.eq.s32.totalorder %s15, 1
      %p32 = por %p30, %p31
      %p33 = scmp.ne.s32.totalorder %s25, %s28
      %p34 = scmp.eq.s32.totalorder %s15, 0
      %p35 = por %p33, %p34
      %p36 = scmp.ne.s32.totalorder %s25, %s28
      %p37 = scmp.eq.s32.totalorder %s20, 1
      %p38 = por %p36, %p37
      %p39 = scmp.ne.s32.totalorder %s28, %s29
      %p40 = scmp.eq.s32.totalorder %s20, 0
      %p41 = por %p39, %p40
      %p42 = scmp.ne.s32.totalorder %s28, %s29
      %p43 = scmp.eq.s32.totalorder %s21, 1
      %p44 = por %p42, %p43
      %p46 = scmp.ne.s32.totalorder %s29, %s45
      %p47 = scmp.eq.s32.totalorder %s21, 0
      %p48 = por %p46, %p47
      %s50 = sadd.s32 %s49, 1
      %p53 = scmp.eq.s32.totalorder %s15, 1
      %p54 = scmp.ne.s32.totalorder %s49, %s51
      %p55 = scmp.eq.s32.totalorder %s15, 0
      %p56 = por %p54, %p55
      %p57 = scmp.ne.s32.totalorder %s49, %s51
      %p58 = scmp.eq.s32.totalorder %s20, 1
      %p59 = por %p57, %p58
      %p60 = scmp.ne.s32.totalorder %s51, %s52
      %p61 = scmp.eq.s32.totalorder %s20, 0
      %p62 = por %p60, %p61
      %p63 = scmp.ne.s32.totalorder %s51, %s52
      %p64 = scmp.eq.s32.totalorder %s21, 1
      %p65 = por %p63, %p64
      %p67 = scmp.ne.s32.totalorder %s52, %s66
      %p68 = scmp.eq.s32.totalorder %s21, 0
      %p69 = por %p67, %p68
      %s71 = sadd.s32 %s70, 1
      %p74 = scmp.eq.s32.totalorder %s15, 1
      %p75 = scmp.ne.s32.totalorder %s70, %s72
      %p76 = scmp.eq.s32.totalorder %s15, 0
      %p77 = por %p75, %p76
      %p78 = scmp.ne.s32.totalorder %s70, %s72
      %p79 = scmp.eq.s32.totalorder %s20, 1
      %p80 = por %p78, %p79
      %p81 = scmp.ne.s32.totalorder %s72, %s73
      %p82 = scmp.eq.s32.totalorder %s20, 0
      %p83 = por %p81, %p82
      %p84 = scmp.ne.s32.totalorder %s72, %s73
      %p85 = scmp.eq.s32.totalorder %s21, 1
      %p86 = por %p84, %p85
      %p88 = scmp.ne.s32.totalorder %s73, %s87
      %p89 = scmp.eq.s32.totalorder %s21, 0
      %p90 = por %p88, %p89
      %s91 = ssub.s32 %s15, %s22
      %p92 = scmp.eq.s32.totalorder %s91, 0
      %s94 = sadd.s32 %s93, 1
      %s95 = scalar_select %p92, %s93, %s94
      %p98 = pneg %p92
      %p99 = scmp.eq.s32.totalorder %s15, 1
      %p100 = por %p98, %p99
      %p101 = scmp.ne.s32.totalorder %s93, %s96
      %p102 = scmp.eq.s32.totalorder %s15, 0
      %p103 = por %p101, %p102
      %p104 = scmp.ne.s32.totalorder %s93, %s96
      %p105 = scmp.eq.s32.totalorder %s20, 1
      %p106 = por %p104, %p105
      %p107 = scmp.ne.s32.totalorder %s96, %s97
      %p108 = scmp.eq.s32.totalorder %s20, 0
      %p109 = por %p107, %p108
      %p110 = scmp.ne.s32.totalorder %s96, %s97
      %p111 = scmp.eq.s32.totalorder %s21, 1
      %p112 = por %p110, %p111
      %p114 = scmp.ne.s32.totalorder %s97, %s113
      %p115 = scmp.eq.s32.totalorder %s21, 0
      %p116 = por %p114, %p115
      %p117 = scmp.le.s32.totalorder 1, %s15
      %p118 = scmp.lt.s32.totalorder %s15, 3
      %p119 = pnand %p117, %p118
      %p120 = pneg %p119
      // Predicated region
      $region9: #{tpu_custom_call.1} parent=5 // pred_check
        _
      $region10: #{tpu_custom_call.1} parent=5 // pred_check_branch
        %122 = sbr.rel (%p119) target = $region12
      $region11: #{tpu_custom_call.1} parent=5 // pred_region
        %s123 = ssub.s32 %s15, 1
        // Predicated region
        $region13: #{tpu_custom_call.1} parent=11 // pred_check
          %p124 = pneg %p62
        $region14: #{tpu_custom_call.1} parent=11 // pred_check_branch
          %126 = sbr.rel (%p124) target = $region16
        $region15: #{tpu_custom_call.1} parent=11 // pred_region
          _
        $region16: #{tpu_custom_call.1} parent=11 // pred_fallthru
          _
        // Predicated region
        $region17: #{tpu_custom_call.1} parent=11 // pred_check
          %p127 = pneg %p83
        $region18: #{tpu_custom_call.1} parent=11 // pred_check_branch
          %129 = sbr.rel (%p127) target = $region20
        $region19: #{tpu_custom_call.1} parent=11 // pred_region
          _
        $region20: #{tpu_custom_call.1} parent=11 // pred_fallthru
          _
      $region12: #{tpu_custom_call.1} parent=5 // pred_fallthru
        _
      %p130 = scmp.lt.s32.totalorder %s15, 2
      // Predicated region
      $region21: #{tpu_custom_call.1} parent=5 // pred_check
        %p131 = pneg %p130
      $region22: #{tpu_custom_call.1} parent=5 // pred_check_branch
        %133 = sbr.rel (%p131) target = $region24
      $region23: #{tpu_custom_call.1} parent=5 // pred_region
        // Predicated region
        $region25: #{tpu_custom_call.1} parent=23 // pred_check
          %p134 = pneg %p35
        $region26: #{tpu_custom_call.1} parent=23 // pred_check_branch
          %136 = sbr.rel (%p134) target = $region28
        $region27: #{tpu_custom_call.1} parent=23 // pred_region
          %s137 = sand.u32 %s25, 1
          %s138 = scalar_lea.sflag [#allocation3], %s137
          %s139 = sand.u32 %s25, 1
          %s140 = smul.addr %s139, 64
          %s141 = scalar_lea.vmem [#allocation2], %s140
          %143 = vsyncadd %s138, 0
          %s144 = smul.addr %s15, 8
          %s145 = smul.addr %s144, 8
          %s146 = scalar_lea.hbm %s0, %s145
          %s147 = sshll.u32 %s146, 4
          %s148 = int_to_ptr.hbm [resolvable:$true] %s147
          %s149 = sshll.u32 %s141, 4
          %s150 = int_to_ptr.vmem [resolvable:$true] %s149
          %155 = dma.hbm_to_vmem [thread:$0]  %s148, 1024, %s150, %s138, 512, 512, 32
        $region28: #{tpu_custom_call.1} parent=23 // pred_fallthru
          _
      $region24: #{tpu_custom_call.1} parent=5 // pred_fallthru
        _
      %p156 = scmp.le.s32.totalorder 1, %s15
      %p157 = scmp.lt.s32.totalorder %s15, 3
      %p158 = pnand %p156, %p157
      %p159 = pneg %p158
      // Predicated region
      $region29: #{tpu_custom_call.1} parent=5 // pred_check
        _
      $region30: #{tpu_custom_call.1} parent=5 // pred_check_branch
        %161 = sbr.rel (%p158) target = $region32
      $region31: #{tpu_custom_call.1} parent=5 // pred_region
        %s162 = ssub.s32 %s15, 1
        %s163 = sand.u32 %s28, 1
        %s164 = scalar_lea.sflag [#allocation3], %s163
        %s165 = sand.u32 %s28, 1
        %s166 = smul.addr %s165, 64
        %s167 = scalar_lea.vmem [#allocation2], %s166
        // Predicated region
        $region33: #{tpu_custom_call.1} parent=31 // pred_check
          %p168 = pneg %p41
        $region34: #{tpu_custom_call.1} parent=31 // pred_check_branch
          %170 = sbr.rel (%p168) target = $region36
        $region35: #{tpu_custom_call.1} parent=31 // pred_region
          %172 = dma.done %s164, 1024
        $region36: #{tpu_custom_call.1} parent=31 // pred_fallthru
          _
        %s173 = sand.u32 %s28, 1
        %s174 = scalar_lea.sflag [#allocation3], %s173
        %s175 = sand.u32 %s28, 1
        %s176 = smul.addr %s175, 64
        %s177 = scalar_lea.vmem [#allocation2], %s176
        %p178 = pneg %p41
        %p179 = pneg %p38
        %p180 = pneg %p62
        %p181 = pneg %p59
        %p182 = pneg %p83
        %p183 = pneg %p80
        %p184 = pneg %p109
        %p185 = pneg %p106
        %s186 = sand.u32 %s96, 1
        %s187 = scalar_lea.sflag [#allocation4], %s186
        %s188 = sand.u32 %s96, 1
        %s189 = smul.addr %s188, 64
        %s190 = scalar_lea.vmem [#allocation5], %s189
        %v191 = vld [vmem:[%s167] sm:$0xff]
        %v192 = vld [vmem:[%s167 + $0x8] sm:$0xff]
        %v193 = vld [vmem:[%s167 + $0x10] sm:$0xff]
        %v194 = vld [vmem:[%s167 + $0x18] sm:$0xff]
        %v195 = vld [vmem:[%s167 + $0x20] sm:$0xff]
        %v196 = vld [vmem:[%s167 + $0x28] sm:$0xff]
        %v197 = vld [vmem:[%s167 + $0x30] sm:$0xff]
        %v198 = vld [vmem:[%s167 + $0x38] sm:$0xff]
        %v199 = vadd.f32 %v191, %v192
        %v200 = vadd.f32 %v199, %v193
        %v201 = vadd.f32 %v200, %v194
        %v202 = vadd.f32 %v201, %v195
        %v203 = vadd.f32 %v202, %v196
        %v204 = vadd.f32 %v203, %v197
        %v205 = vadd.f32 %v204, %v198
        %206 = vadd.xlane.f32.xlu0 %v205
        %v207 = vpop.xlane.xlu0 %206
        %v208 = vrot.slane %v207, 4
        %v209 = vadd.f32 %v207, %v208
        %v210 = vrot.slane %v209, 2
        %v211 = vadd.f32 %v209, %v210
        %v212 = vrot.slane %v211, 1
        %v213 = vadd.f32 %v211, %v212
        %s214 = vtos %v213
        %v215 = vstv %s214
        %v216 = vrcp.pop 8192.0
        %v217 = vmul.f32 8192.0, %v216
        %v218 = vsub.f32 1.0, %v217
        %v219 = vmul.f32 %v216, %v218
        %v220 = vadd.f32 %v216, %v219
        %vm221 = vweird.f32 %v216
        %v222 = vsel %vm221, %v216, %v220
        %v223 = vmul.f32 %v215, %v222
        %v224 = vmul.f32 %v191, %v191
        %v225 = vmul.f32 %v192, %v192
        %v226 = vmul.f32 %v193, %v193
        %v227 = vmul.f32 %v194, %v194
        %v228 = vmul.f32 %v195, %v195
        %v229 = vmul.f32 %v196, %v196
        %v230 = vmul.f32 %v197, %v197
        %v231 = vmul.f32 %v198, %v198
        %v232 = vadd.f32 %v224, %v225
        %v233 = vadd.f32 %v232, %v226
        %v234 = vadd.f32 %v233, %v227
        %v235 = vadd.f32 %v234, %v228
        %v236 = vadd.f32 %v235, %v229
        %v237 = vadd.f32 %v236, %v230
        %v238 = vadd.f32 %v237, %v231
        %239 = vadd.xlane.f32.xlu0 %v238
        %v240 = vpop.xlane.xlu0 %239
        %v241 = vrot.slane %v240, 4
        %v242 = vadd.f32 %v240, %v241
        %v243 = vrot.slane %v242, 2
        %v244 = vadd.f32 %v242, %v243
        %v245 = vrot.slane %v244, 1
        %v246 = vadd.f32 %v244, %v245
        %s247 = vtos %v246
        %v248 = vstv %s247
        %v249 = vmul.f32 %v248, %v222
        %v250 = vmul.f32 %v223, %v223
        %v251 = vsub.f32 %v249, %v250
        %v252 = vmax.f32 %v251, 0.0
        %v253 = vadd.f32 %v252, 1e-05
        %v254 = vrsqrt.pop %v253
        %v255 = vmul.f32 %v254, %v253
        %v256 = vmul.f32 %v255, %v254
        %v257 = vmul.f32 0.5, %v256
        %v258 = vsub.f32 1.5, %v257
        %v259 = vmul.f32 %v254, %v258
        %vm260 = vweird.f32 %v253
        %vm261 = vweird.f32 %v254
        %vm262 = vmor %vm260, %vm261
        %v263 = vsel %vm262, %v254, %v259
        %v264 = vld [vmem:[%s1] sm:$0xff]
        %v265 = vld [vmem:[%s1 + $0x8] sm:$0xff]
        %v266 = vmul.f32 %v264, %v263
        %v267 = vmul.f32 %v265, %v263
        %v268 = vld [vmem:[%s2] sm:$0xff]
        %v269 = vld [vmem:[%s2 + $0x8] sm:$0xff]
        %v270 = vmul.f32 %v223, %v266
        %v271 = vmul.f32 %v223, %v267
        %v272 = vsub.f32 %v268, %v270
        %v273 = vsub.f32 %v269, %v271
        %275 = vset.pattern.permute.xlu0 0
        %276 = vperm.xlu0 %275, %v266
        %v277 = vpop.permute.xlu0 %276
        %280 = vset.pattern.permute.xlu0 0
        %281 = vperm.xlu0 %280, %v267
        %v282 = vpop.permute.xlu0 %281
        %v284 = vmul.f32 %v191, %v277
        %v285 = vmul.f32 %v192, %v277
        %v286 = vmul.f32 %v193, %v277
        %v287 = vmul.f32 %v194, %v277
        %v288 = vmul.f32 %v195, %v282
        %v289 = vmul.f32 %v196, %v282
        %v290 = vmul.f32 %v197, %v282
        %v291 = vmul.f32 %v198, %v282
        %293 = vset.pattern.permute.xlu0 0
        %294 = vperm.xlu0 %293, %v272
        %v295 = vpop.permute.xlu0 %294
        %298 = vset.pattern.permute.xlu0 0
        %299 = vperm.xlu0 %298, %v273
        %v300 = vpop.permute.xlu0 %299
        %v302 = vadd.f32 %v284, %v295
        %v303 = vadd.f32 %v285, %v295
        %v304 = vadd.f32 %v286, %v295
        %v305 = vadd.f32 %v287, %v295
        %v306 = vadd.f32 %v288, %v300
        %v307 = vadd.f32 %v289, %v300
        %v308 = vadd.f32 %v290, %v300
        %v309 = vadd.f32 %v291, %v300
        %310 = vst [vmem:[%s190] sm:$0xff] %v302
        %311 = vst [vmem:[%s190 + $0x8] sm:$0xff] %v303
        %312 = vst [vmem:[%s190 + $0x10] sm:$0xff] %v304
        %313 = vst [vmem:[%s190 + $0x18] sm:$0xff] %v305
        %314 = vst [vmem:[%s190 + $0x20] sm:$0xff] %v306
        %315 = vst [vmem:[%s190 + $0x28] sm:$0xff] %v307
        %316 = vst [vmem:[%s190 + $0x30] sm:$0xff] %v308
        %317 = vst [vmem:[%s190 + $0x38] sm:$0xff] %v309
        %s318 = sand.u32 %s96, 1
        %s319 = scalar_lea.sflag [#allocation4], %s318
        %s320 = sand.u32 %s96, 1
        %s321 = smul.addr %s320, 64
        %s322 = scalar_lea.vmem [#allocation5], %s321
        // Predicated region
        $region37: #{tpu_custom_call.1} parent=31 // pred_check
          %p323 = pneg %p106
        $region38: #{tpu_custom_call.1} parent=31 // pred_check_branch
          %325 = sbr.rel (%p323) target = $region40
        $region39: #{tpu_custom_call.1} parent=31 // pred_region
          %327 = vsyncadd %s319, 0
          %s328 = smul.addr %s20, 8
          %s329 = smul.addr %s328, 8
          %s330 = scalar_lea.hbm %s3, %s329
          %s331 = sshll.u32 %s322, 4
          %s332 = int_to_ptr.vmem [resolvable:$true] %s331
          %s333 = sshll.u32 %s330, 4
          %s334 = int_to_ptr.hbm [resolvable:$true] %s333
          %339 = dma.vmem_to_hbm [thread:$0]  %s332, 1024, %s334, %s319, 512, 512, 32
        $region40: #{tpu_custom_call.1} parent=31 // pred_fallthru
          _
      $region32: #{tpu_custom_call.1} parent=5 // pred_fallthru
        _
      %p340 = scmp.le.s32.totalorder 2, %s15
      // Predicated region
      $region41: #{tpu_custom_call.1} parent=5 // pred_check
        %p341 = pneg %p340
      $region42: #{tpu_custom_call.1} parent=5 // pred_check_branch
        %343 = sbr.rel (%p341) target = $region44
      $region43: #{tpu_custom_call.1} parent=5 // pred_region
        %s344 = ssub.s32 %s15, 2
        // Predicated region
        $region45: #{tpu_custom_call.1} parent=43 // pred_check
          %p345 = pneg %p112
        $region46: #{tpu_custom_call.1} parent=43 // pred_check_branch
          %347 = sbr.rel (%p345) target = $region48
        $region47: #{tpu_custom_call.1} parent=43 // pred_region
          %s348 = sand.u32 %s97, 1
          %s349 = scalar_lea.sflag [#allocation4], %s348
          %s350 = sand.u32 %s97, 1
          %s351 = smul.addr %s350, 64
          %s352 = scalar_lea.vmem [#allocation5], %s351
          %354 = dma.done %s349, 1024
        $region48: #{tpu_custom_call.1} parent=43 // pred_fallthru
          _
      $region44: #{tpu_custom_call.1} parent=5 // pred_fallthru
        _
    $region6: #{tpu_custom_call.1} parent=1 // loop_footer
      %s19 = sadd.s32 1, %s15
    $region7: #{tpu_custom_call.1} parent=1 // loop_footer_branch
      %14 = sbr.rel target = $region3
    $region8: #{tpu_custom_call.1} parent=1 // loop_exit
      _
    %355 = vsyncpa [#allocation3], 1
    %s356 = scalar_lea.sflag [#allocation3], 1
    %357 = vsyncpa %s356, 1
    %358 = vsyncpa [#allocation4], 1
    %s359 = scalar_lea.sflag [#allocation4], 1
    %360 = vsyncpa %s359, 1

</llo_original>
